<compile_context>
chip_gen: v5e
topology: v5e:2x2
jax: 0.10.0
libtpu: 0.0.40
codegen_flags: <defaults>
</compile_context>

<pallas_src>
import jax
import jax.numpy as jnp
from jax import lax
from jax.experimental import pallas as pl
from jax.experimental.pallas import tpu as pltpu


def mlp_kernel(x_ref, w1_ref, b1_ref, w2_ref, b2_ref, o_ref):
    # x_ref : (TB, in_dim)   native row-major batch tile (streamed)
    # w1_ref: (hid, in_dim)  VMEM-resident across the grid
    # b1_ref: (hid, 1)
    # w2_ref: (hid, 1)
    # b2_ref: (1, 1)         scalar in SMEM
    # o_ref : (1, TB)        lane-dense output tile
    # fc1 on the MXU: contract in_dim of both operands -> (hid, TB), batch on lanes.
    h = lax.dot_general(
        w1_ref[...], x_ref[...],
        dimension_numbers=(((1,), (1,)), ((), ())),
        preferred_element_type=jnp.float32)
    h = jnp.maximum(h + b1_ref[...], 0.0)                    # (hid, TB), f32
    # fc2 (hid -> 1): VPU multiply + XLU sublane reduce (no second MXU round trip).
    y = jnp.sum(h * w2_ref[...], axis=0, keepdims=True)      # (1, TB)
    o_ref[...] = (y + b2_ref[0, 0]).astype(o_ref.dtype)


def simple_model_forward(x, w1, b1, w2, b2, *, tb=16384):
    """y = relu(x @ W1^T + b1) @ W2^T + b2, params in PyTorch layout."""
    B, in_dim = x.shape
    hid = w1.shape[0]

    b1_col = b1.reshape(hid, 1)
    w2_col = w2.reshape(hid, 1)            # torch W2 is (1, hid)
    b2_sc = b2.reshape(1, 1)

    if B <= tb:
        tb_eff = B                         # single full-array block
    else:
        assert tb % 128 == 0               # keeps partial-last-block legal
        tb_eff = tb
    num_blocks = pl.cdiv(B, tb_eff)

    # VMEM budget: the (tb, in_dim) f32 tile is lane-padded to 128 in VMEM
    # (512*tb bytes per buffer); leave room for pipelined buffers plus
    # in-kernel temporaries.  Set explicitly so v5e's 16 MiB default scoped
    # limit does not force tiny windows.
    x_tile_bytes = tb_eff * 128 * 4
    vmem_limit = int(min(100 * 2**20, max(48 * 2**20, 3 * x_tile_bytes + 16 * 2**20)))

    if num_blocks >= 3:
        # Pipeline is essentially DMA-only; a third in-flight buffer hides
        # DMA issue latency.
        x_spec = pl.BlockSpec((tb_eff, in_dim), lambda i: (i, 0),
                              pipeline_mode=pl.Buffered(3))
    else:
        x_spec = pl.BlockSpec((tb_eff, in_dim), lambda i: (i, 0))

    out = pl.pallas_call(
        mlp_kernel,
        out_shape=jax.ShapeDtypeStruct((1, B), jnp.float32),
        grid=(num_blocks,),
        in_specs=[
            x_spec,                                            # stream x tiles
            pl.BlockSpec((hid, in_dim), lambda i: (0, 0)),     # resident weights
            pl.BlockSpec((hid, 1), lambda i: (0, 0)),
            pl.BlockSpec((hid, 1), lambda i: (0, 0)),
            pl.BlockSpec(memory_space=pltpu.MemorySpace.SMEM),  # scalar bias b2
        ],
        out_specs=pl.BlockSpec((1, tb_eff), lambda i: (0, i)),
        compiler_params=pltpu.CompilerParams(
            dimension_semantics=("parallel",),                 # megacore split on v7x
            vmem_limit_bytes=vmem_limit),
    )(x, w1, b1_col, w2_col, b2_sc)

    # (1, B) -> (B, 1) is a pure row-major reshape (free).
    return out.reshape(B, 1)


def init_params(key):
    # Deterministic init mimicking PyTorch defaults (uniform +/- 1/sqrt(fan_in)),
    # stored in PyTorch layout: W (out, in), b (out,).
    k1, k2, k3, k4 = jax.random.split(key, 4)
    in1, out1 = 10, 20
    in2, out2 = 20, 1
    bound1 = 1.0 / jnp.sqrt(in1)
    bound2 = 1.0 / jnp.sqrt(in2)
    w1 = jax.random.uniform(k1, (out1, in1), jnp.float32, -bound1, bound1)
    b1 = jax.random.uniform(k2, (out1,), jnp.float32, -bound1, bound1)
    w2 = jax.random.uniform(k3, (out2, in2), jnp.float32, -bound2, bound2)
    b2 = jax.random.uniform(k4, (out2,), jnp.float32, -bound2, bound2)
    return w1, b1, w2, b2


if __name__ == "__main__":
    key = jax.random.PRNGKey(0)
    xkey, x2key, pkey = jax.random.split(key, 3)

    w1, b1, w2, b2 = init_params(pkey)

    # Small demo batch (single full-array block path).
    x_small = jax.random.normal(xkey, (8, 10), jnp.float32)
    out_small = jax.block_until_ready(simple_model_forward(x_small, w1, b1, w2, b2))
    ref_small = jnp.maximum(x_small @ w1.T + b1, 0.0) @ w2.T + b2
    assert out_small.shape == (8, 1)
    assert jnp.allclose(out_small, ref_small, atol=1e-5, rtol=1e-5)

    # Non-multiple batch with a small tile: exercises the streamed grid,
    # Buffered(3) pipelining and Pallas' partial-last-block path (no jnp.pad).
    x_big = jax.random.normal(x2key, (700, 10), jnp.float32)
    out_big = jax.block_until_ready(
        simple_model_forward(x_big, w1, b1, w2, b2, tb=256))
    ref_big = jnp.maximum(x_big @ w1.T + b1, 0.0) @ w2.T + b2
    assert out_big.shape == (700, 1)
    assert jnp.allclose(out_big, ref_big, atol=1e-4, rtol=1e-4)

    print("KERNEL_OK")
</pallas_src>

<mosaic_0001>
module attributes {stable_mosaic.version = 11 : i64} {
  func.func @mlp_kernel(%arg0: i32, %arg1: memref<8x10xf32, #tpu.memory_space<vmem>>, %arg2: memref<20x10xf32, #tpu.memory_space<vmem>>, %arg3: memref<20x1xf32, #tpu.memory_space<vmem>>, %arg4: memref<20x1xf32, #tpu.memory_space<vmem>>, %arg5: memref<1x1xf32, #tpu.memory_space<smem>>, %arg6: memref<1x8xf32, #tpu.memory_space<vmem>>) attributes {dimension_semantics = [#tpu.dimension_semantics<parallel>], iteration_bounds = array<i64: 1>, scalar_prefetch = 0 : i64, scratch_operands = 0 : i64, tpu.core_type = #tpu.core_type<tc>, window_params = [{transform_indices = @transform_0, window_bounds = array<i64: 8, 10>}, {pipeline_mode = #tpu.pipeline_mode<synchronous>, transform_indices = @transform_1, window_bounds = array<i64: 20, 10>}, {pipeline_mode = #tpu.pipeline_mode<synchronous>, transform_indices = @transform_2, window_bounds = array<i64: 20, 1>}, {pipeline_mode = #tpu.pipeline_mode<synchronous>, transform_indices = @transform_3, window_bounds = array<i64: 20, 1>}, {transform_indices = @transform_4, window_bounds = array<i64: 1, 1>}, {transform_indices = @transform_5, window_bounds = array<i64: 1, 8>}]} {
    %c0 = arith.constant 0 : index
    %c0_0 = arith.constant 0 : index
    %0 = vector.load %arg2[%c0, %c0_0] : memref<20x10xf32, #tpu.memory_space<vmem>>, vector<20x10xf32>
    %c0_1 = arith.constant 0 : index
    %c0_2 = arith.constant 0 : index
    %1 = vector.load %arg1[%c0_1, %c0_2] : memref<8x10xf32, #tpu.memory_space<vmem>>, vector<8x10xf32>
    %cst = arith.constant dense<0.000000e+00> : vector<20x8xf32>
    %2 = tpu.matmul %0, %1, %cst {dimension_numbers = #tpu.dot_dimension_numbers<[1], [1], [0], [0], [0, 0, 1, 0], [], []>} : vector<20x10xf32>, vector<8x10xf32>, vector<20x8xf32> -> vector<20x8xf32>
    %c0_3 = arith.constant 0 : index
    %c0_4 = arith.constant 0 : index
    %3 = vector.load %arg3[%c0_3, %c0_4] : memref<20x1xf32, #tpu.memory_space<vmem>>, vector<20x1xf32>
    %4 = vector.broadcast %3 : vector<20x1xf32> to vector<20x8xf32>
    %5 = arith.addf %2, %4 : vector<20x8xf32>
    %cst_5 = arith.constant 0.000000e+00 : f32
    %6 = vector.broadcast %cst_5 : f32 to vector<20x8xf32>
    %7 = arith.maximumf %5, %6 : vector<20x8xf32>
    %c0_6 = arith.constant 0 : index
    %c0_7 = arith.constant 0 : index
    %8 = vector.load %arg4[%c0_6, %c0_7] : memref<20x1xf32, #tpu.memory_space<vmem>>, vector<20x1xf32>
    %9 = vector.broadcast %8 : vector<20x1xf32> to vector<20x8xf32>
    %10 = arith.mulf %7, %9 : vector<20x8xf32>
    %cst_8 = arith.constant dense<0.000000e+00> : vector<8xf32>
    %11 = vector.multi_reduction <add>, %10, %cst_8 [0] : vector<20x8xf32> to vector<8xf32>
    %12 = vector.shape_cast %11 : vector<8xf32> to vector<1x8xf32>
    %c0_9 = arith.constant 0 : index
    %c0_10 = arith.constant 0 : index
    %13 = memref.load %arg5[%c0_9, %c0_10] : memref<1x1xf32, #tpu.memory_space<smem>>
    %14 = vector.broadcast %13 : f32 to vector<1x8xf32>
    %15 = arith.addf %12, %14 : vector<1x8xf32>
    %c0_11 = arith.constant 0 : index
    %c0_12 = arith.constant 0 : index
    %16 = vector.load %arg6[%c0_11, %c0_12] : memref<1x8xf32, #tpu.memory_space<vmem>>, vector<1x8xf32>
    tpu.vector_store %arg6[%c0_11, %c0_12], %15 {strides = array<i32>} : memref<1x8xf32, #tpu.memory_space<vmem>>, vector<1x8xf32>,
    return
  }
  func.func @transform_0(%arg0: i32) -> (i32, i32) {
    %c0_i32 = arith.constant 0 : i32
    %c0_i32_0 = arith.constant 0 : i32
    return %arg0, %c0_i32 : i32, i32
  }
  func.func @transform_1(%arg0: i32) -> (i32, i32) {
    %c0_i32 = arith.constant 0 : i32
    %c0_i32_0 = arith.constant 0 : i32
    %c0_i32_1 = arith.constant 0 : i32
    return %c0_i32, %c0_i32_0 : i32, i32
  }
  func.func @transform_2(%arg0: i32) -> (i32, i32) {
    %c0_i32 = arith.constant 0 : i32
    %c0_i32_0 = arith.constant 0 : i32
    %c0_i32_1 = arith.constant 0 : i32
    return %c0_i32, %c0_i32_0 : i32, i32
  }
  func.func @transform_3(%arg0: i32) -> (i32, i32) {
    %c0_i32 = arith.constant 0 : i32
    %c0_i32_0 = arith.constant 0 : i32
    %c0_i32_1 = arith.constant 0 : i32
    return %c0_i32, %c0_i32_0 : i32, i32
  }
  func.func @transform_4(%arg0: i32) -> (i32, i32) {
    %c0_i32 = arith.constant 0 : i32
    %c0_i32_0 = arith.constant 0 : i32
    %c0_i32_1 = arith.constant 0 : i32
    return %c0_i32, %c0_i32_0 : i32, i32
  }
  func.func @transform_5(%arg0: i32) -> (i32, i32) {
    %c0_i32 = arith.constant 0 : i32
    %c0_i32_0 = arith.constant 0 : i32
    return %c0_i32, %arg0 : i32, i32
  }
}

</mosaic_0001>

<llo_original>
// kernel: tpu_custom_call.1
$region0: #{tpu_custom_call.1}
  #allocation0 [shape = 'u32[]', space=smem, size = 0x4, offset = 0x4, fixed_abs, tag = 'smem constant byte address 0x4 - core index']
  #allocation1 [shape = 'u32[72,128]{1,0:T(1,128)}', space=vmem, size = 0x9000, scoped, tag = 'internal scratch']
  #allocation2 [shape = 'f32[1,1]{1,0:T(1,128)S(6)}', space=smem, size = 0x200, scoped, tag = 'scoped memory for tpu_custom_call.1']
  %s0 = inlined_call_operand.vmem [shape: f32[8,10], index: 0, kind: input, shape index: {}]
  %s1 = inlined_call_operand.vmem [shape: f32[20,10], index: 1, kind: input, shape index: {}]
  %s2 = inlined_call_operand.vmem [shape: f32[20,1], index: 2, kind: input, shape index: {}]
  %s3 = inlined_call_operand.vmem [shape: f32[20,1], index: 3, kind: input, shape index: {}]
  %s4 = inlined_call_operand.<no memory space> [shape: f32[1,1], index: 4, kind: input, shape index: {}]
  %s5 = inlined_call_operand.hbm [shape: f32[1,8], index: 5, kind: output, shape index: {}]
  %s6 = sld [smem:[#allocation0]]
  $region30: #{tpu_custom_call.1} parent=0
    _
  %s8 = ssub.s32 1, %s6
  %s9 = scalar_select 0, %s8, %s6
  %10 = sst [smem:[#allocation2]] %s4
  $region1: #{tpu_custom_call.1} parent=0
    #allocation3 [shape = 'u8[512]{0}', space=vmem, size = 0x400, scoped, tag = 'output window, operand 0, single buffered']
    #allocation4 [shape = 's32[1]{0}', space=sflag, size = 0x4, scoped, tag = 'scoped memory for tpu_custom_call.1']
    %11 = vsyncpa [#allocation4], 0
    // Predicated region
    $region2: #{tpu_custom_call.1} parent=1 // pred_check
      _
    $region3: #{tpu_custom_call.1} parent=1 // pred_check_branch
      %13 = sbr.rel (0) target = $region5
    $region4: #{tpu_custom_call.1} parent=1 // pred_region
      _
    $region5: #{tpu_custom_call.1} parent=1 // pred_fallthru
      _
    // Predicated region
    $region6: #{tpu_custom_call.1} parent=1 // pred_check
      _
    $region7: #{tpu_custom_call.1} parent=1 // pred_check_branch
      %15 = sbr.rel (0) target = $region9
    $region8: #{tpu_custom_call.1} parent=1 // pred_region
      _
    $region9: #{tpu_custom_call.1} parent=1 // pred_fallthru
      _
    // Predicated region
    $region10: #{tpu_custom_call.1} parent=1 // pred_check
      _
    $region11: #{tpu_custom_call.1} parent=1 // pred_check_branch
      %17 = sbr.rel (0) target = $region13
    $region12: #{tpu_custom_call.1} parent=1 // pred_region
      _
    $region13: #{tpu_custom_call.1} parent=1 // pred_fallthru
      _
    // Predicated region
    $region14: #{tpu_custom_call.1} parent=1 // pred_check
      _
    $region15: #{tpu_custom_call.1} parent=1 // pred_check_branch
      %19 = sbr.rel (0) target = $region17
    $region16: #{tpu_custom_call.1} parent=1 // pred_region
      _
    $region17: #{tpu_custom_call.1} parent=1 // pred_fallthru
      _
    // Predicated region
    $region18: #{tpu_custom_call.1} parent=1 // pred_check
      _
    $region19: #{tpu_custom_call.1} parent=1 // pred_check_branch
      %21 = sbr.rel (0) target = $region21
    $region20: #{tpu_custom_call.1} parent=1 // pred_region
      _
    $region21: #{tpu_custom_call.1} parent=1 // pred_fallthru
      _
    %v22 = vld [vmem:[%s1] sm:$0xff]
    %v23 = vld [vmem:[%s1 + $0x8] sm:$0xff]
    %v24 = vld [vmem:[%s1 + $0x10] sm:$0xf]
    %v25 = vld [vmem:[%s0] sm:$0xff]
    %v26 = vld [vmem:[%s2] sm:$0xff]
    %v27 = vld [vmem:[%s2 + $0x8] sm:$0xff]
    %v28 = vld [vmem:[%s2 + $0x10] sm:$0xf]
    %30 = vset.pattern.permute.xlu0 0
    %31 = vperm.xlu0 %30, %v26
    %v32 = vpop.permute.xlu0 %31
    %35 = vset.pattern.permute.xlu0 0
    %36 = vperm.xlu0 %35, %v27
    %v37 = vpop.permute.xlu0 %36
    %40 = vset.pattern.permute.xlu0 0
    %41 = vperm.xlu0 %40, %v28
    %v42 = vpop.permute.xlu0 %41
    %vm44 = vcmask 80896
    %v46 = vsel %vm44, %v22, 0
    %v49 = vsel %vm44, %v23, 0
    %v52 = vsel %vm44, %v24, 0
    %v55 = vsel %vm44, %v25, 0
    %57 = vmatpush.xpose.msra.mxu0 0.0
    %58 = vmatpush.xpose.msra.mxu0 0.0
    %59 = vmatpush.xpose.msra.mxu0 0.0
    %60 = vmatpush.xpose.msra.mxu0 0.0
    %61 = vmatpush.xpose.msra.mxu0 0.0
    %62 = vmatpush.xpose.msra.mxu0 0.0
    %63 = vmatpush.xpose.msra.mxu0 0.0
    %64 = vmatpush.xpose.msra.mxu0 0.0
    %65 = vmatpush.xpose.msra.mxu0 0.0
    %66 = vmatpush.xpose.msra.mxu0 0.0
    %67 = vmatpush.xpose.msra.mxu0 0.0
    %68 = vmatpush.xpose.msra.mxu0 0.0
    %69 = vmatpush.xpose.msra.mxu0 0.0
    %70 = vmatpush.xpose.msra.mxu0 0.0
    %71 = vmatpush.xpose.msra.mxu0 0.0
    %72 = vmatpush.xpose.msra.mxu0 %v55
    %73 = vmatmul.f32.gmra.mxu0 %v46
    %v74 = vpop.f32.mrf.mxu0
    %v75 = vadd.f32 %v32, %v74
    %76 = vmatmul.f32.gmra.mxu0 %v49
    %v77 = vpop.f32.mrf.mxu0
    %v78 = vadd.f32 %v37, %v77
    %79 = vmatmul.f32.gmra.mxu0 %v52
    %v80 = vpop.f32.mrf.mxu0
    %v81 = vadd.f32 %v42, %v80
    %82 = vdwg.mxu0
    %v83 = vmax.f32 %v75, 0.0
    %v84 = vmax.f32 %v78, 0.0
    %v85 = vmax.f32 %v81, 0.0
    %v86 = vld [vmem:[%s3] sm:$0xff]
    %v87 = vld [vmem:[%s3 + $0x8] sm:$0xff]
    %v88 = vld [vmem:[%s3 + $0x10] sm:$0xf]
    %90 = vset.pattern.permute.xlu0 0
    %91 = vperm.xlu0 %90, %v86
    %v92 = vpop.permute.xlu0 %91
    %95 = vset.pattern.permute.xlu0 0
    %96 = vperm.xlu0 %95, %v87
    %v97 = vpop.permute.xlu0 %96
    %100 = vset.pattern.permute.xlu0 0
    %101 = vperm.xlu0 %100, %v88
    %v102 = vpop.permute.xlu0 %101
    %v104 = vmul.f32 %v83, %v92
    %v105 = vmul.f32 %v84, %v97
    %v106 = vmul.f32 %v85, %v102
    %vm107 = vcmask 64512
    %v108 = vsel %vm107, %v104, 0.0
    %v109 = vsel %vm107, %v105, 0.0
    %v110 = vadd.f32 %v108, %v109
    %vm111 = vcmask 60416
    %v112 = vsel %vm111, %v106, 0.0
    %v113 = vadd.f32 %v110, %v112
    %v114 = vrot.slane %v113, 4
    %v115 = vadd.f32 %v113, %v114
    %v116 = vrot.slane %v115, 2
    %v117 = vadd.f32 %v115, %v116
    %v118 = vrot.slane %v117, 1
    %v119 = vadd.f32 %v117, %v118
    %s120 = sld [smem:[#allocation2]]
    %v121 = vstv %s120
    %v122 = vadd.f32 %v119, %v121
    %vm123 = vcmask 57344
    %124 = vst.msk [vmem:[#allocation3] sm:$0x1] %vm123, %v122
    // Predicated region
    $region22: #{tpu_custom_call.1} parent=1 // pred_check
      _
    $region23: #{tpu_custom_call.1} parent=1 // pred_check_branch
      %126 = sbr.rel (0) target = $region25
    $region24: #{tpu_custom_call.1} parent=1 // pred_region
      %128 = vsyncadd [#allocation4], 0
      %s130 = sshll.u32 [#allocation3], 4
      %s131 = int_to_ptr.vmem [resolvable:$true] %s130
      %s132 = sshll.u32 %s5, 4
      %s133 = int_to_ptr.hbm [resolvable:$true] %s132
      %135 = dma.vmem_to_hbm [thread:$0]  %s131, 16, %s133, [#allocation4]
    $region25: #{tpu_custom_call.1} parent=1 // pred_fallthru
      _
    // Predicated region
    $region26: #{tpu_custom_call.1} parent=1 // pred_check
      _
    $region27: #{tpu_custom_call.1} parent=1 // pred_check_branch
      %137 = sbr.rel (0) target = $region29
    $region28: #{tpu_custom_call.1} parent=1 // pred_region
      %139 = dma.done [#allocation4], 16
    $region29: #{tpu_custom_call.1} parent=1 // pred_fallthru
      _
    %140 = vsyncpa [#allocation4], 1

</llo_original>
